<compile_context>
chip_gen: v6e
topology: v6e:2x2x1
jax: 0.10.0
libtpu: 0.0.40
codegen_flags: <defaults>
</compile_context>

<pallas_src>
import functools

import jax
import jax.numpy as jnp
from jax.experimental import pallas as pl
from jax.experimental.pallas import tpu as pltpu


def _abs_pow_int(dx, gamma):
    """|dx|**gamma for integer gamma >= 1 using only multiplies (+abs if odd)."""
    sq = dx * dx
    if gamma % 2 == 0:
        out = sq
        for _ in range(gamma // 2 - 1):
            out = out * sq
        return out
    out = jnp.abs(dx)
    for _ in range(gamma // 2):
        out = out * sq
    return out


def _attractor_kernel(x_ref, b_ref, w1t_ref, b1t_ref, w2t_ref, b2t_ref, out_ref,
                      *, alpha, gamma, n_attractors, kind):
    # ---- MLP head: two 1x1 convs == per-pixel matmuls (pixels on lanes) ----
    # x_ref: (C, tp); w1t_ref: (mlp, C); w2t_ref: (natt, mlp)
    h = jnp.dot(w1t_ref[...], x_ref[...], preferred_element_type=jnp.float32)
    h = jnp.maximum(h + b1t_ref[...], 0.0)                      # ReLU, (mlp, tp)
    a = jnp.dot(w2t_ref[...], h, preferred_element_type=jnp.float32)
    a = a + b2t_ref[...]                                        # (natt, tp)
    # Numerically stable Softplus: log(1 + exp(a))
    A = jnp.maximum(a, 0.0) + jnp.log1p(jnp.exp(-jnp.abs(a)))

    # ---- Exponential attractor: accumulation loop over attractors ----
    c = b_ref[...].astype(jnp.float32)                          # (n_bins, tp)
    delta = jnp.zeros_like(c)
    for i in range(n_attractors):                               # static unroll
        dx = A[i:i + 1, :] - c                                  # (n_bins, tp)
        if isinstance(gamma, int) and gamma >= 1:
            mag = _abs_pow_int(dx, gamma)                       # no pow in hot loop
        else:
            mag = jnp.abs(dx) ** gamma                          # fallback (non-integer gamma)
        delta = delta + jnp.exp(-alpha * mag) * dx
    if kind == "mean":
        delta = delta * (1.0 / n_attractors)

    out_ref[...] = (c + delta).astype(out_ref.dtype)


def attractor_layer_unnormed(x, b_prev, params, *, n_attractors, alpha=300.0,
                             gamma=2, kind="sum", tile_p=8192):
    """x: (N, C, H, W), b_prev: (N, n_bins, H, W) (already at target resolution).

    Returns (b_new_centers, B_centers) with shape (N, n_bins, H, W), both equal
    (mirrors the module's API).
    """
    # TODO(synk): general bilinear resize of b_prev / prev_b_embedding add when
    # their spatial size != (H, W); here they are assumed already aligned.
    n, c, h, w = x.shape
    nb = b_prev.shape[1]
    hw = h * w

    # Free reshapes in NCHW: pixels are already lane-major per batch element.
    x_flat = x.reshape(n, c, hw)
    b_flat = b_prev.reshape(n, nb, hw)

    # Effective pixel tile: multiple of 128, no larger than (padded) HW.
    tile_eff = max(128, min(int(tile_p), pl.cdiv(hw, 128) * 128))
    tile_eff = pl.cdiv(tile_eff, 128) * 128
    # Keep the total grid >= 2 steps when possible (v7x has 2 TensorCores).
    if n * pl.cdiv(hw, tile_eff) < 2 and hw > 128:
        tile_eff = max(128, pl.cdiv(pl.cdiv(hw, 2), 128) * 128)

    hw_pad = pl.cdiv(hw, tile_eff) * tile_eff
    if hw_pad != hw:
        x_flat = jnp.pad(x_flat, ((0, 0), (0, 0), (0, hw_pad - hw)))
        b_flat = jnp.pad(b_flat, ((0, 0), (0, 0), (0, hw_pad - hw)))

    w1, b1, w2, b2 = params                    # (c, mlp), (1, mlp), (mlp, natt), (1, natt)
    mlp = w1.shape[1]
    # Transposed parameter layouts for the pixels-on-lanes kernel.
    w1t = jnp.transpose(w1)                    # (mlp, c)
    b1t = jnp.reshape(b1, (mlp, 1))            # (mlp, 1)
    w2t = jnp.transpose(w2)                    # (natt, mlp)
    b2t = jnp.reshape(b2, (n_attractors, 1))   # (natt, 1)

    kern = functools.partial(_attractor_kernel, alpha=float(alpha),
                             gamma=gamma, n_attractors=int(n_attractors),
                             kind=kind)

    out_flat = pl.pallas_call(
        kern,
        out_shape=jax.ShapeDtypeStruct((n, nb, hw_pad), b_prev.dtype),
        grid=(n, hw_pad // tile_eff),
        in_specs=[
            # Batch is a Squeezed grid axis; kernel sees 2-D tiles.
            pl.BlockSpec((pl.Squeezed(), c, tile_eff), lambda b, i: (b, 0, i)),
            pl.BlockSpec((pl.Squeezed(), nb, tile_eff), lambda b, i: (b, 0, i)),
            pl.BlockSpec((mlp, c), lambda b, i: (0, 0)),                # W1^T (resident)
            pl.BlockSpec((mlp, 1), lambda b, i: (0, 0)),                # b1
            pl.BlockSpec((n_attractors, mlp), lambda b, i: (0, 0)),     # W2^T (resident)
            pl.BlockSpec((n_attractors, 1), lambda b, i: (0, 0)),       # b2
        ],
        out_specs=pl.BlockSpec((pl.Squeezed(), nb, tile_eff), lambda b, i: (b, 0, i)),
        compiler_params=pltpu.CompilerParams(
            dimension_semantics=("parallel", "parallel"),
            vmem_limit_bytes=32 << 20,   # within physical VMEM on v5e/v6e/v7x
        ),
    )(x_flat, b_flat, w1t, b1t, w2t, b2t)

    out = out_flat[:, :, :hw].reshape(n, nb, h, w)
    # Two identical outputs to mirror the module's API (normed / unnormed variants).
    return out, out


def _reference(x, b_prev, params, *, n_attractors, alpha, gamma, kind):
    """Pure-JAX reference of the same forward pass (NCHW)."""
    w1, b1, w2, b2 = params
    h = jnp.einsum("nchw,cm->nmhw", x, w1) + b1.reshape(1, -1, 1, 1)
    h = jnp.maximum(h, 0.0)
    a = jnp.einsum("nmhw,ma->nahw", h, w2) + b2.reshape(1, -1, 1, 1)
    A = jax.nn.softplus(a)
    c = b_prev
    delta = jnp.zeros_like(c)
    for i in range(n_attractors):
        dx = A[:, i:i + 1] - c
        delta = delta + jnp.exp(-alpha * jnp.abs(dx) ** gamma) * dx
    if kind == "mean":
        delta = delta / n_attractors
    return c + delta


if __name__ == "__main__":
    # Small, module-consistent shapes.
    N, C, H, W = 2, 4, 16, 16        # x: feature block (n, c, h, w)
    N_BINS = 8                        # previous bin centers
    N_ATTRACTORS = 16
    MLP_DIM = 128
    ALPHA, GAMMA, KIND = 300.0, 2, "sum"

    key = jax.random.PRNGKey(0)
    kx, kb, k1, k2, k3, k4 = jax.random.split(key, 6)

    x = jax.random.normal(kx, (N, C, H, W), dtype=jnp.float32)
    # Unbounded previous bin centers (already at target (H, W); align_corners
    # bilinear resize to the same size is the identity).
    b_prev = jax.random.uniform(kb, (N, N_BINS, H, W), dtype=jnp.float32,
                                minval=0.1, maxval=5.0)

    # Deterministic parameter init (1x1 conv weights stored as (in, out) matrices).
    w1 = jax.random.normal(k1, (C, MLP_DIM), dtype=jnp.float32) * (1.0 / jnp.sqrt(C))
    b1 = jax.random.normal(k2, (1, MLP_DIM), dtype=jnp.float32) * 0.01
    w2 = jax.random.normal(k3, (MLP_DIM, N_ATTRACTORS), dtype=jnp.float32) * (1.0 / jnp.sqrt(MLP_DIM))
    b2 = jax.random.normal(k4, (1, N_ATTRACTORS), dtype=jnp.float32) * 0.01
    params = (w1, b1, w2, b2)

    b_new, B_centers = attractor_layer_unnormed(
        x, b_prev, params, n_attractors=N_ATTRACTORS,
        alpha=ALPHA, gamma=GAMMA, kind=KIND)
    jax.block_until_ready(b_new)

    ref = _reference(x, b_prev, params, n_attractors=N_ATTRACTORS,
                     alpha=ALPHA, gamma=GAMMA, kind=KIND)
    assert b_new.shape == (N, N_BINS, H, W)
    assert jnp.allclose(b_new, ref, rtol=1e-4, atol=1e-4), "mismatch vs reference"
    assert jnp.allclose(B_centers, b_new)

    print("KERNEL_OK")
</pallas_src>

<mosaic_0001>
module attributes {stable_mosaic.version = 11 : i64} {
  func.func @_attractor_kernel(%arg0: i32, %arg1: i32, %arg2: memref<1x4x256xf32, #tpu.memory_space<vmem>>, %arg3: memref<1x8x256xf32, #tpu.memory_space<vmem>>, %arg4: memref<128x4xf32, #tpu.memory_space<vmem>>, %arg5: memref<128x1xf32, #tpu.memory_space<vmem>>, %arg6: memref<16x128xf32, #tpu.memory_space<vmem>>, %arg7: memref<16x1xf32, #tpu.memory_space<vmem>>, %arg8: memref<1x8x256xf32, #tpu.memory_space<vmem>>) attributes {dimension_semantics = [#tpu.dimension_semantics<parallel>, #tpu.dimension_semantics<parallel>], iteration_bounds = array<i64: 2, 1>, scalar_prefetch = 0 : i64, scratch_operands = 0 : i64, tpu.core_type = #tpu.core_type<tc>, window_params = [{transform_indices = @transform_0, window_bounds = array<i64: 1, 4, 256>}, {transform_indices = @transform_1, window_bounds = array<i64: 1, 8, 256>}, {pipeline_mode = #tpu.pipeline_mode<synchronous>, transform_indices = @transform_2, window_bounds = array<i64: 128, 4>}, {pipeline_mode = #tpu.pipeline_mode<synchronous>, transform_indices = @transform_3, window_bounds = array<i64: 128, 1>}, {pipeline_mode = #tpu.pipeline_mode<synchronous>, transform_indices = @transform_4, window_bounds = array<i64: 16, 128>}, {pipeline_mode = #tpu.pipeline_mode<synchronous>, transform_indices = @transform_5, window_bounds = array<i64: 16, 1>}, {transform_indices = @transform_6, window_bounds = array<i64: 1, 8, 256>}]} {
    %c0 = arith.constant 0 : index
    %c0_0 = arith.constant 0 : index
    %0 = vector.load %arg4[%c0, %c0_0] : memref<128x4xf32, #tpu.memory_space<vmem>>, vector<128x4xf32>
    %c0_1 = arith.constant 0 : index
    %c0_2 = arith.constant 0 : index
    %c0_3 = arith.constant 0 : index
    %1 = vector.load %arg2[%c0_1, %c0_2, %c0_3] : memref<1x4x256xf32, #tpu.memory_space<vmem>>, vector<1x4x256xf32>
    %2 = vector.shape_cast %1 : vector<1x4x256xf32> to vector<4x256xf32>
    %cst = arith.constant dense<0.000000e+00> : vector<128x256xf32>
    %3 = tpu.matmul %0, %2, %cst {dimension_numbers = #tpu.dot_dimension_numbers<[1], [0], [0], [1], [0, 0, 1, 1], [], []>} : vector<128x4xf32>, vector<4x256xf32>, vector<128x256xf32> -> vector<128x256xf32>
    %c0_4 = arith.constant 0 : index
    %c0_5 = arith.constant 0 : index
    %4 = vector.load %arg5[%c0_4, %c0_5] : memref<128x1xf32, #tpu.memory_space<vmem>>, vector<128x1xf32>
    %5 = vector.broadcast %4 : vector<128x1xf32> to vector<128x256xf32>
    %6 = arith.addf %3, %5 : vector<128x256xf32>
    %cst_6 = arith.constant 0.000000e+00 : f32
    %7 = vector.broadcast %cst_6 : f32 to vector<128x256xf32>
    %8 = arith.maximumf %6, %7 : vector<128x256xf32>
    %c0_7 = arith.constant 0 : index
    %c0_8 = arith.constant 0 : index
    %9 = vector.load %arg6[%c0_7, %c0_8] : memref<16x128xf32, #tpu.memory_space<vmem>>, vector<16x128xf32>
    %cst_9 = arith.constant dense<0.000000e+00> : vector<16x256xf32>
    %10 = tpu.matmul %9, %8, %cst_9 {dimension_numbers = #tpu.dot_dimension_numbers<[1], [0], [0], [1], [0, 0, 1, 1], [], []>} : vector<16x128xf32>, vector<128x256xf32>, vector<16x256xf32> -> vector<16x256xf32>
    %c0_10 = arith.constant 0 : index
    %c0_11 = arith.constant 0 : index
    %11 = vector.load %arg7[%c0_10, %c0_11] : memref<16x1xf32, #tpu.memory_space<vmem>>, vector<16x1xf32>
    %12 = vector.broadcast %11 : vector<16x1xf32> to vector<16x256xf32>
    %13 = arith.addf %10, %12 : vector<16x256xf32>
    %cst_12 = arith.constant 0.000000e+00 : f32
    %14 = vector.broadcast %cst_12 : f32 to vector<16x256xf32>
    %15 = arith.maximumf %13, %14 : vector<16x256xf32>
    %16 = math.absf %13 : vector<16x256xf32>
    %cst_13 = arith.constant 0.000000e+00 : f32
    %17 = vector.broadcast %cst_13 : f32 to vector<16x256xf32>
    %18 = arith.subf %17, %16 : vector<16x256xf32>
    %19 = math.exp %18 : vector<16x256xf32>
    %20 = math.log1p %19 : vector<16x256xf32>
    %21 = arith.addf %15, %20 : vector<16x256xf32>
    %c0_14 = arith.constant 0 : index
    %c0_15 = arith.constant 0 : index
    %c0_16 = arith.constant 0 : index
    %22 = vector.load %arg3[%c0_14, %c0_15, %c0_16] : memref<1x8x256xf32, #tpu.memory_space<vmem>>, vector<1x8x256xf32>
    %23 = vector.shape_cast %22 : vector<1x8x256xf32> to vector<8x256xf32>
    %cst_17 = arith.constant 0.000000e+00 : f32
    %24 = vector.broadcast %cst_17 : f32 to vector<8x256xf32>
    %25 = vector.extract_strided_slice %21 {offsets = [0, 0], sizes = [1, 256], strides = [1, 1]} : vector<16x256xf32> to vector<1x256xf32>
    %26 = vector.broadcast %25 : vector<1x256xf32> to vector<8x256xf32>
    %27 = arith.subf %26, %23 : vector<8x256xf32>
    %28 = arith.mulf %27, %27 : vector<8x256xf32>
    %cst_18 = arith.constant -3.000000e+02 : f32
    %29 = vector.broadcast %cst_18 : f32 to vector<8x256xf32>
    %30 = arith.mulf %29, %28 : vector<8x256xf32>
    %31 = math.exp %30 : vector<8x256xf32>
    %32 = arith.mulf %31, %27 : vector<8x256xf32>
    %33 = arith.addf %24, %32 : vector<8x256xf32>
    %34 = vector.extract_strided_slice %21 {offsets = [1, 0], sizes = [1, 256], strides = [1, 1]} : vector<16x256xf32> to vector<1x256xf32>
    %35 = vector.broadcast %34 : vector<1x256xf32> to vector<8x256xf32>
    %36 = arith.subf %35, %23 : vector<8x256xf32>
    %37 = arith.mulf %36, %36 : vector<8x256xf32>
    %cst_19 = arith.constant -3.000000e+02 : f32
    %38 = vector.broadcast %cst_19 : f32 to vector<8x256xf32>
    %39 = arith.mulf %38, %37 : vector<8x256xf32>
    %40 = math.exp %39 : vector<8x256xf32>
    %41 = arith.mulf %40, %36 : vector<8x256xf32>
    %42 = arith.addf %33, %41 : vector<8x256xf32>
    %43 = vector.extract_strided_slice %21 {offsets = [2, 0], sizes = [1, 256], strides = [1, 1]} : vector<16x256xf32> to vector<1x256xf32>
    %44 = vector.broadcast %43 : vector<1x256xf32> to vector<8x256xf32>
    %45 = arith.subf %44, %23 : vector<8x256xf32>
    %46 = arith.mulf %45, %45 : vector<8x256xf32>
    %cst_20 = arith.constant -3.000000e+02 : f32
    %47 = vector.broadcast %cst_20 : f32 to vector<8x256xf32>
    %48 = arith.mulf %47, %46 : vector<8x256xf32>
    %49 = math.exp %48 : vector<8x256xf32>
    %50 = arith.mulf %49, %45 : vector<8x256xf32>
    %51 = arith.addf %42, %50 : vector<8x256xf32>
    %52 = vector.extract_strided_slice %21 {offsets = [3, 0], sizes = [1, 256], strides = [1, 1]} : vector<16x256xf32> to vector<1x256xf32>
    %53 = vector.broadcast %52 : vector<1x256xf32> to vector<8x256xf32>
    %54 = arith.subf %53, %23 : vector<8x256xf32>
    %55 = arith.mulf %54, %54 : vector<8x256xf32>
    %cst_21 = arith.constant -3.000000e+02 : f32
    %56 = vector.broadcast %cst_21 : f32 to vector<8x256xf32>
    %57 = arith.mulf %56, %55 : vector<8x256xf32>
    %58 = math.exp %57 : vector<8x256xf32>
    %59 = arith.mulf %58, %54 : vector<8x256xf32>
    %60 = arith.addf %51, %59 : vector<8x256xf32>
    %61 = vector.extract_strided_slice %21 {offsets = [4, 0], sizes = [1, 256], strides = [1, 1]} : vector<16x256xf32> to vector<1x256xf32>
    %62 = vector.broadcast %61 : vector<1x256xf32> to vector<8x256xf32>
    %63 = arith.subf %62, %23 : vector<8x256xf32>
    %64 = arith.mulf %63, %63 : vector<8x256xf32>
    %cst_22 = arith.constant -3.000000e+02 : f32
    %65 = vector.broadcast %cst_22 : f32 to vector<8x256xf32>
    %66 = arith.mulf %65, %64 : vector<8x256xf32>
    %67 = math.exp %66 : vector<8x256xf32>
    %68 = arith.mulf %67, %63 : vector<8x256xf32>
    %69 = arith.addf %60, %68 : vector<8x256xf32>
    %70 = vector.extract_strided_slice %21 {offsets = [5, 0], sizes = [1, 256], strides = [1, 1]} : vector<16x256xf32> to vector<1x256xf32>
    %71 = vector.broadcast %70 : vector<1x256xf32> to vector<8x256xf32>
    %72 = arith.subf %71, %23 : vector<8x256xf32>
    %73 = arith.mulf %72, %72 : vector<8x256xf32>
    %cst_23 = arith.constant -3.000000e+02 : f32
    %74 = vector.broadcast %cst_23 : f32 to vector<8x256xf32>
    %75 = arith.mulf %74, %73 : vector<8x256xf32>
    %76 = math.exp %75 : vector<8x256xf32>
    %77 = arith.mulf %76, %72 : vector<8x256xf32>
    %78 = arith.addf %69, %77 : vector<8x256xf32>
    %79 = vector.extract_strided_slice %21 {offsets = [6, 0], sizes = [1, 256], strides = [1, 1]} : vector<16x256xf32> to vector<1x256xf32>
    %80 = vector.broadcast %79 : vector<1x256xf32> to vector<8x256xf32>
    %81 = arith.subf %80, %23 : vector<8x256xf32>
    %82 = arith.mulf %81, %81 : vector<8x256xf32>
    %cst_24 = arith.constant -3.000000e+02 : f32
    %83 = vector.broadcast %cst_24 : f32 to vector<8x256xf32>
    %84 = arith.mulf %83, %82 : vector<8x256xf32>
    %85 = math.exp %84 : vector<8x256xf32>
    %86 = arith.mulf %85, %81 : vector<8x256xf32>
    %87 = arith.addf %78, %86 : vector<8x256xf32>
    %88 = vector.extract_strided_slice %21 {offsets = [7, 0], sizes = [1, 256], strides = [1, 1]} : vector<16x256xf32> to vector<1x256xf32>
    %89 = vector.broadcast %88 : vector<1x256xf32> to vector<8x256xf32>
    %90 = arith.subf %89, %23 : vector<8x256xf32>
    %91 = arith.mulf %90, %90 : vector<8x256xf32>
    %cst_25 = arith.constant -3.000000e+02 : f32
    %92 = vector.broadcast %cst_25 : f32 to vector<8x256xf32>
    %93 = arith.mulf %92, %91 : vector<8x256xf32>
    %94 = math.exp %93 : vector<8x256xf32>
    %95 = arith.mulf %94, %90 : vector<8x256xf32>
    %96 = arith.addf %87, %95 : vector<8x256xf32>
    %97 = vector.extract_strided_slice %21 {offsets = [8, 0], sizes = [1, 256], strides = [1, 1]} : vector<16x256xf32> to vector<1x256xf32>
    %98 = vector.broadcast %97 : vector<1x256xf32> to vector<8x256xf32>
    %99 = arith.subf %98, %23 : vector<8x256xf32>
    %100 = arith.mulf %99, %99 : vector<8x256xf32>
    %cst_26 = arith.constant -3.000000e+02 : f32
    %101 = vector.broadcast %cst_26 : f32 to vector<8x256xf32>
    %102 = arith.mulf %101, %100 : vector<8x256xf32>
    %103 = math.exp %102 : vector<8x256xf32>
    %104 = arith.mulf %103, %99 : vector<8x256xf32>
    %105 = arith.addf %96, %104 : vector<8x256xf32>
    %106 = vector.extract_strided_slice %21 {offsets = [9, 0], sizes = [1, 256], strides = [1, 1]} : vector<16x256xf32> to vector<1x256xf32>
    %107 = vector.broadcast %106 : vector<1x256xf32> to vector<8x256xf32>
    %108 = arith.subf %107, %23 : vector<8x256xf32>
    %109 = arith.mulf %108, %108 : vector<8x256xf32>
    %cst_27 = arith.constant -3.000000e+02 : f32
    %110 = vector.broadcast %cst_27 : f32 to vector<8x256xf32>
    %111 = arith.mulf %110, %109 : vector<8x256xf32>
    %112 = math.exp %111 : vector<8x256xf32>
    %113 = arith.mulf %112, %108 : vector<8x256xf32>
    %114 = arith.addf %105, %113 : vector<8x256xf32>
    %115 = vector.extract_strided_slice %21 {offsets = [10, 0], sizes = [1, 256], strides = [1, 1]} : vector<16x256xf32> to vector<1x256xf32>
    %116 = vector.broadcast %115 : vector<1x256xf32> to vector<8x256xf32>
    %117 = arith.subf %116, %23 : vector<8x256xf32>
    %118 = arith.mulf %117, %117 : vector<8x256xf32>
    %cst_28 = arith.constant -3.000000e+02 : f32
    %119 = vector.broadcast %cst_28 : f32 to vector<8x256xf32>
    %120 = arith.mulf %119, %118 : vector<8x256xf32>
    %121 = math.exp %120 : vector<8x256xf32>
    %122 = arith.mulf %121, %117 : vector<8x256xf32>
    %123 = arith.addf %114, %122 : vector<8x256xf32>
    %124 = vector.extract_strided_slice %21 {offsets = [11, 0], sizes = [1, 256], strides = [1, 1]} : vector<16x256xf32> to vector<1x256xf32>
    %125 = vector.broadcast %124 : vector<1x256xf32> to vector<8x256xf32>
    %126 = arith.subf %125, %23 : vector<8x256xf32>
    %127 = arith.mulf %126, %126 : vector<8x256xf32>
    %cst_29 = arith.constant -3.000000e+02 : f32
    %128 = vector.broadcast %cst_29 : f32 to vector<8x256xf32>
    %129 = arith.mulf %128, %127 : vector<8x256xf32>
    %130 = math.exp %129 : vector<8x256xf32>
    %131 = arith.mulf %130, %126 : vector<8x256xf32>
    %132 = arith.addf %123, %131 : vector<8x256xf32>
    %133 = vector.extract_strided_slice %21 {offsets = [12, 0], sizes = [1, 256], strides = [1, 1]} : vector<16x256xf32> to vector<1x256xf32>
    %134 = vector.broadcast %133 : vector<1x256xf32> to vector<8x256xf32>
    %135 = arith.subf %134, %23 : vector<8x256xf32>
    %136 = arith.mulf %135, %135 : vector<8x256xf32>
    %cst_30 = arith.constant -3.000000e+02 : f32
    %137 = vector.broadcast %cst_30 : f32 to vector<8x256xf32>
    %138 = arith.mulf %137, %136 : vector<8x256xf32>
    %139 = math.exp %138 : vector<8x256xf32>
    %140 = arith.mulf %139, %135 : vector<8x256xf32>
    %141 = arith.addf %132, %140 : vector<8x256xf32>
    %142 = vector.extract_strided_slice %21 {offsets = [13, 0], sizes = [1, 256], strides = [1, 1]} : vector<16x256xf32> to vector<1x256xf32>
    %143 = vector.broadcast %142 : vector<1x256xf32> to vector<8x256xf32>
    %144 = arith.subf %143, %23 : vector<8x256xf32>
    %145 = arith.mulf %144, %144 : vector<8x256xf32>
    %cst_31 = arith.constant -3.000000e+02 : f32
    %146 = vector.broadcast %cst_31 : f32 to vector<8x256xf32>
    %147 = arith.mulf %146, %145 : vector<8x256xf32>
    %148 = math.exp %147 : vector<8x256xf32>
    %149 = arith.mulf %148, %144 : vector<8x256xf32>
    %150 = arith.addf %141, %149 : vector<8x256xf32>
    %151 = vector.extract_strided_slice %21 {offsets = [14, 0], sizes = [1, 256], strides = [1, 1]} : vector<16x256xf32> to vector<1x256xf32>
    %152 = vector.broadcast %151 : vector<1x256xf32> to vector<8x256xf32>
    %153 = arith.subf %152, %23 : vector<8x256xf32>
    %154 = arith.mulf %153, %153 : vector<8x256xf32>
    %cst_32 = arith.constant -3.000000e+02 : f32
    %155 = vector.broadcast %cst_32 : f32 to vector<8x256xf32>
    %156 = arith.mulf %155, %154 : vector<8x256xf32>
    %157 = math.exp %156 : vector<8x256xf32>
    %158 = arith.mulf %157, %153 : vector<8x256xf32>
    %159 = arith.addf %150, %158 : vector<8x256xf32>
    %160 = vector.extract_strided_slice %21 {offsets = [15, 0], sizes = [1, 256], strides = [1, 1]} : vector<16x256xf32> to vector<1x256xf32>
    %161 = vector.broadcast %160 : vector<1x256xf32> to vector<8x256xf32>
    %162 = arith.subf %161, %23 : vector<8x256xf32>
    %163 = arith.mulf %162, %162 : vector<8x256xf32>
    %cst_33 = arith.constant -3.000000e+02 : f32
    %164 = vector.broadcast %cst_33 : f32 to vector<8x256xf32>
    %165 = arith.mulf %164, %163 : vector<8x256xf32>
    %166 = math.exp %165 : vector<8x256xf32>
    %167 = arith.mulf %166, %162 : vector<8x256xf32>
    %168 = arith.addf %159, %167 : vector<8x256xf32>
    %169 = arith.addf %23, %168 : vector<8x256xf32>
    %c0_34 = arith.constant 0 : index
    %c0_35 = arith.constant 0 : index
    %c0_36 = arith.constant 0 : index
    %170 = vector.load %arg8[%c0_34, %c0_35, %c0_36] : memref<1x8x256xf32, #tpu.memory_space<vmem>>, vector<1x8x256xf32>
    %171 = vector.shape_cast %170 : vector<1x8x256xf32> to vector<8x256xf32>
    %172 = vector.shape_cast %169 : vector<8x256xf32> to vector<1x8x256xf32>
    tpu.vector_store %arg8[%c0_34, %c0_35, %c0_36], %172 {strides = array<i32>} : memref<1x8x256xf32, #tpu.memory_space<vmem>>, vector<1x8x256xf32>,
    return
  }
  func.func @transform_0(%arg0: i32, %arg1: i32) -> (i32, i32, i32) {
    %c0_i32 = arith.constant 0 : i32
    %c0_i32_0 = arith.constant 0 : i32
    return %arg0, %c0_i32, %arg1 : i32, i32, i32
  }
  func.func @transform_1(%arg0: i32, %arg1: i32) -> (i32, i32, i32) {
    %c0_i32 = arith.constant 0 : i32
    %c0_i32_0 = arith.constant 0 : i32
    return %arg0, %c0_i32, %arg1 : i32, i32, i32
  }
  func.func @transform_2(%arg0: i32, %arg1: i32) -> (i32, i32) {
    %c0_i32 = arith.constant 0 : i32
    %c0_i32_0 = arith.constant 0 : i32
    %c0_i32_1 = arith.constant 0 : i32
    return %c0_i32, %c0_i32_0 : i32, i32
  }
  func.func @transform_3(%arg0: i32, %arg1: i32) -> (i32, i32) {
    %c0_i32 = arith.constant 0 : i32
    %c0_i32_0 = arith.constant 0 : i32
    %c0_i32_1 = arith.constant 0 : i32
    return %c0_i32, %c0_i32_0 : i32, i32
  }
  func.func @transform_4(%arg0: i32, %arg1: i32) -> (i32, i32) {
    %c0_i32 = arith.constant 0 : i32
    %c0_i32_0 = arith.constant 0 : i32
    %c0_i32_1 = arith.constant 0 : i32
    return %c0_i32, %c0_i32_0 : i32, i32
  }
  func.func @transform_5(%arg0: i32, %arg1: i32) -> (i32, i32) {
    %c0_i32 = arith.constant 0 : i32
    %c0_i32_0 = arith.constant 0 : i32
    %c0_i32_1 = arith.constant 0 : i32
    return %c0_i32, %c0_i32_0 : i32, i32
  }
  func.func @transform_6(%arg0: i32, %arg1: i32) -> (i32, i32, i32) {
    %c0_i32 = arith.constant 0 : i32
    %c0_i32_0 = arith.constant 0 : i32
    return %arg0, %c0_i32, %arg1 : i32, i32, i32
  }
}

</mosaic_0001>

<llo_original>
// kernel: tpu_custom_call.1
$region0: #{tpu_custom_call.1}
  #allocation0 [shape = 'u32[]', space=smem, size = 0x4, offset = 0x4, fixed_abs, tag = 'smem constant byte address 0x4 - core index']
  #allocation1 [shape = 'u32[144,128]{1,0:T(1,128)}', space=vmem, size = 0x12000, scoped, tag = 'internal scratch']
  %s0 = inlined_call_operand.vmem [shape: f32[2,4,256], index: 0, kind: input, shape index: {}]
  %s1 = inlined_call_operand.vmem [shape: f32[2,8,256], index: 1, kind: input, shape index: {}]
  %s2 = inlined_call_operand.vmem [shape: f32[128,4], index: 2, kind: input, shape index: {}]
  %s3 = inlined_call_operand.vmem [shape: f32[128,1], index: 3, kind: input, shape index: {}]
  %s4 = inlined_call_operand.vmem [shape: f32[16,128], index: 4, kind: input, shape index: {}]
  %s5 = inlined_call_operand.vmem [shape: f32[16,1], index: 5, kind: input, shape index: {}]
  %s6 = inlined_call_operand.hbm [shape: f32[2,8,256], index: 6, kind: output, shape index: {}]
  %s7 = sld [smem:[#allocation0]]
  $region57: #{tpu_custom_call.1} parent=0
    _
  %s9 = ssub.s32 1, %s7
  %s10 = scalar_select 0, %s9, %s7
  $region1: #{tpu_custom_call.1} parent=0
    #allocation2 [shape = 'u8[16384]{0}', space=vmem, size = 0x4000, scoped, tag = 'output window, operand 0']
    #allocation3 [shape = 's32[2]{0}', space=sflag, size = 0x8, scoped, tag = 'scoped memory for tpu_custom_call.1']
    %11 = vsyncpa [#allocation3], 0
    %s12 = scalar_lea.sflag [#allocation3], 1
    %13 = vsyncpa %s12, 0
    loop: start=0, step=1, limit=4
    $region2: #{tpu_custom_call.1} parent=1 // loop_pre_header
      _
    $region3: #{tpu_custom_call.1} parent=1 // loop_header
      %s15 = sphi 0, %s19
      %p16 = scmp.ge.s32.totalorder %s15, 4
      %s22 = sphi 0, %s34
      %s23 = sphi 0, %s30
      %s24 = sphi 0, %s22
      %s25 = sphi 0, %s23
      %s26 = sphi 0, %s24
      %s27 = sphi 0, %s25
      %s39 = sphi 0, %s41
      %s42 = sphi 0, %s39
      %s43 = sphi 0, %s42
      %s59 = sphi 0, %s43
      %s67 = sphi 0, %s69
      %s70 = sphi 0, %s67
      %s71 = sphi 0, %s70
      %s87 = sphi 0, %s71
      %s91 = sphi 0, %s91
      %s93 = sphi 0, %s91
      %s94 = sphi 0, %s93
      %s108 = sphi 0, %s94
      %s112 = sphi 0, %s112
      %s114 = sphi 0, %s112
      %s115 = sphi 0, %s114
      %s129 = sphi 0, %s115
      %s133 = sphi 0, %s133
      %s135 = sphi 0, %s133
      %s136 = sphi 0, %s135
      %s150 = sphi 0, %s136
      %s154 = sphi 0, %s154
      %s156 = sphi 0, %s154
      %s157 = sphi 0, %s156
      %s171 = sphi 0, %s157
      %s179 = sphi 0, %s181
      %s182 = sphi 0, %s179
      %s183 = sphi 0, %s182
      %s199 = sphi 0, %s183
    $region4: #{tpu_custom_call.1} parent=1 // loop_header_branch
      %18 = sbr.rel (%p16) target = $region8
    $region5: #{tpu_custom_call.1} parent=1 // loop_body
      %s20 = ssub.s32 %s15, 1
      %s21 = ssub.s32 %s15, 2
      %s28 = sadd.s32 1, %s23
      %p29 = scmp.ge.s32.totalorder %s28, 1
      %s30 = scalar_select %p29, 0, %s28
      %s31 = sadd.s32 1, %s22
      %s32 = scalar_select %p29, %s31, %s22
      %p33 = scmp.ge.s32.totalorder %s32, 2
      %s34 = scalar_select %p33, 0, %s32
      %s35 = ssub.s32 %s22, %s34
      %s36 = ssub.s32 %s23, %s30
      %s37 = sor.u32 %s35, %s36
      %p38 = scmp.eq.s32.totalorder %s37, 0
      %s40 = sadd.s32 %s39, 1
      %s41 = scalar_select %p38, %s39, %s40
      %p44 = pneg %p38
      %p45 = scmp.eq.s32.totalorder %s15, 1
      %p46 = por %p44, %p45
      %p47 = scmp.ne.s32.totalorder %s39, %s42
      %p48 = scmp.eq.s32.totalorder %s15, 0
      %p49 = por %p47, %p48
      %p50 = scmp.ne.s32.totalorder %s39, %s42
      %p51 = scmp.eq.s32.totalorder %s20, 1
      %p52 = por %p50, %p51
      %p53 = scmp.ne.s32.totalorder %s42, %s43
      %p54 = scmp.eq.s32.totalorder %s20, 0
      %p55 = por %p53, %p54
      %p56 = scmp.ne.s32.totalorder %s42, %s43
      %p57 = scmp.eq.s32.totalorder %s21, 1
      %p58 = por %p56, %p57
      %p60 = scmp.ne.s32.totalorder %s43, %s59
      %p61 = scmp.eq.s32.totalorder %s21, 0
      %p62 = por %p60, %p61
      %s63 = ssub.s32 %s22, %s34
      %s64 = ssub.s32 %s23, %s30
      %s65 = sor.u32 %s63, %s64
      %p66 = scmp.eq.s32.totalorder %s65, 0
      %s68 = sadd.s32 %s67, 1
      %s69 = scalar_select %p66, %s67, %s68
      %p72 = pneg %p66
      %p73 = scmp.eq.s32.totalorder %s15, 1
      %p74 = por %p72, %p73
      %p75 = scmp.ne.s32.totalorder %s67, %s70
      %p76 = scmp.eq.s32.totalorder %s15, 0
      %p77 = por %p75, %p76
      %p78 = scmp.ne.s32.totalorder %s67, %s70
      %p79 = scmp.eq.s32.totalorder %s20, 1
      %p80 = por %p78, %p79
      %p81 = scmp.ne.s32.totalorder %s70, %s71
      %p82 = scmp.eq.s32.totalorder %s20, 0
      %p83 = por %p81, %p82
      %p84 = scmp.ne.s32.totalorder %s70, %s71
      %p85 = scmp.eq.s32.totalorder %s21, 1
      %p86 = por %p84, %p85
      %p88 = scmp.ne.s32.totalorder %s71, %s87
      %p89 = scmp.eq.s32.totalorder %s21, 0
      %p90 = por %p88, %p89
      %s92 = sadd.s32 %s91, 1
      %p95 = scmp.eq.s32.totalorder %s15, 1
      %p96 = scmp.ne.s32.totalorder %s91, %s93
      %p97 = scmp.eq.s32.totalorder %s15, 0
      %p98 = por %p96, %p97
      %p99 = scmp.ne.s32.totalorder %s91, %s93
      %p100 = scmp.eq.s32.totalorder %s20, 1
      %p101 = por %p99, %p100
      %p102 = scmp.ne.s32.totalorder %s93, %s94
      %p103 = scmp.eq.s32.totalorder %s20, 0
      %p104 = por %p102, %p103
      %p105 = scmp.ne.s32.totalorder %s93, %s94
      %p106 = scmp.eq.s32.totalorder %s21, 1
      %p107 = por %p105, %p106
      %p109 = scmp.ne.s32.totalorder %s94, %s108
      %p110 = scmp.eq.s32.totalorder %s21, 0
      %p111 = por %p109, %p110
      %s113 = sadd.s32 %s112, 1
      %p116 = scmp.eq.s32.totalorder %s15, 1
      %p117 = scmp.ne.s32.totalorder %s112, %s114
      %p118 = scmp.eq.s32.totalorder %s15, 0
      %p119 = por %p117, %p118
      %p120 = scmp.ne.s32.totalorder %s112, %s114
      %p121 = scmp.eq.s32.totalorder %s20, 1
      %p122 = por %p120, %p121
      %p123 = scmp.ne.s32.totalorder %s114, %s115
      %p124 = scmp.eq.s32.totalorder %s20, 0
      %p125 = por %p123, %p124
      %p126 = scmp.ne.s32.totalorder %s114, %s115
      %p127 = scmp.eq.s32.totalorder %s21, 1
      %p128 = por %p126, %p127
      %p130 = scmp.ne.s32.totalorder %s115, %s129
      %p131 = scmp.eq.s32.totalorder %s21, 0
      %p132 = por %p130, %p131
      %s134 = sadd.s32 %s133, 1
      %p137 = scmp.eq.s32.totalorder %s15, 1
      %p138 = scmp.ne.s32.totalorder %s133, %s135
      %p139 = scmp.eq.s32.totalorder %s15, 0
      %p140 = por %p138, %p139
      %p141 = scmp.ne.s32.totalorder %s133, %s135
      %p142 = scmp.eq.s32.totalorder %s20, 1
      %p143 = por %p141, %p142
      %p144 = scmp.ne.s32.totalorder %s135, %s136
      %p145 = scmp.eq.s32.totalorder %s20, 0
      %p146 = por %p144, %p145
      %p147 = scmp.ne.s32.totalorder %s135, %s136
      %p148 = scmp.eq.s32.totalorder %s21, 1
      %p149 = por %p147, %p148
      %p151 = scmp.ne.s32.totalorder %s136, %s150
      %p152 = scmp.eq.s32.totalorder %s21, 0
      %p153 = por %p151, %p152
      %s155 = sadd.s32 %s154, 1
      %p158 = scmp.eq.s32.totalorder %s15, 1
      %p159 = scmp.ne.s32.totalorder %s154, %s156
      %p160 = scmp.eq.s32.totalorder %s15, 0
      %p161 = por %p159, %p160
      %p162 = scmp.ne.s32.totalorder %s154, %s156
      %p163 = scmp.eq.s32.totalorder %s20, 1
      %p164 = por %p162, %p163
      %p165 = scmp.ne.s32.totalorder %s156, %s157
      %p166 = scmp.eq.s32.totalorder %s20, 0
      %p167 = por %p165, %p166
      %p168 = scmp.ne.s32.totalorder %s156, %s157
      %p169 = scmp.eq.s32.totalorder %s21, 1
      %p170 = por %p168, %p169
      %p172 = scmp.ne.s32.totalorder %s157, %s171
      %p173 = scmp.eq.s32.totalorder %s21, 0
      %p174 = por %p172, %p173
      %s175 = ssub.s32 %s22, %s34
      %s176 = ssub.s32 %s23, %s30
      %s177 = sor.u32 %s175, %s176
      %p178 = scmp.eq.s32.totalorder %s177, 0
      %s180 = sadd.s32 %s179, 1
      %s181 = scalar_select %p178, %s179, %s180
      %p184 = pneg %p178
      %p185 = scmp.eq.s32.totalorder %s15, 1
      %p186 = por %p184, %p185
      %p187 = scmp.ne.s32.totalorder %s179, %s182
      %p188 = scmp.eq.s32.totalorder %s15, 0
      %p189 = por %p187, %p188
      %p190 = scmp.ne.s32.totalorder %s179, %s182
      %p191 = scmp.eq.s32.totalorder %s20, 1
      %p192 = por %p190, %p191
      %p193 = scmp.ne.s32.totalorder %s182, %s183
      %p194 = scmp.eq.s32.totalorder %s20, 0
      %p195 = por %p193, %p194
      %p196 = scmp.ne.s32.totalorder %s182, %s183
      %p197 = scmp.eq.s32.totalorder %s21, 1
      %p198 = por %p196, %p197
      %p200 = scmp.ne.s32.totalorder %s183, %s199
      %p201 = scmp.eq.s32.totalorder %s21, 0
      %p202 = por %p200, %p201
      %p203 = scmp.le.s32.totalorder 1, %s15
      %p204 = scmp.lt.s32.totalorder %s15, 3
      %p205 = pnand %p203, %p204
      %p206 = pneg %p205
      // Predicated region
      $region9: #{tpu_custom_call.1} parent=5 // pred_check
        _
      $region10: #{tpu_custom_call.1} parent=5 // pred_check_branch
        %208 = sbr.rel (%p205) target = $region12
      $region11: #{tpu_custom_call.1} parent=5 // pred_region
        %s209 = ssub.s32 %s15, 1
        // Predicated region
        $region13: #{tpu_custom_call.1} parent=11 // pred_check
          %p210 = pneg %p104
        $region14: #{tpu_custom_call.1} parent=11 // pred_check_branch
          %212 = sbr.rel (%p210) target = $region16
        $region15: #{tpu_custom_call.1} parent=11 // pred_region
          _
        $region16: #{tpu_custom_call.1} parent=11 // pred_fallthru
          _
        // Predicated region
        $region17: #{tpu_custom_call.1} parent=11 // pred_check
          %p213 = pneg %p125
        $region18: #{tpu_custom_call.1} parent=11 // pred_check_branch
          %215 = sbr.rel (%p213) target = $region20
        $region19: #{tpu_custom_call.1} parent=11 // pred_region
          _
        $region20: #{tpu_custom_call.1} parent=11 // pred_fallthru
          _
        // Predicated region
        $region21: #{tpu_custom_call.1} parent=11 // pred_check
          %p216 = pneg %p146
        $region22: #{tpu_custom_call.1} parent=11 // pred_check_branch
          %218 = sbr.rel (%p216) target = $region24
        $region23: #{tpu_custom_call.1} parent=11 // pred_region
          _
        $region24: #{tpu_custom_call.1} parent=11 // pred_fallthru
          _
        // Predicated region
        $region25: #{tpu_custom_call.1} parent=11 // pred_check
          %p219 = pneg %p167
        $region26: #{tpu_custom_call.1} parent=11 // pred_check_branch
          %221 = sbr.rel (%p219) target = $region28
        $region27: #{tpu_custom_call.1} parent=11 // pred_region
          _
        $region28: #{tpu_custom_call.1} parent=11 // pred_fallthru
          _
      $region12: #{tpu_custom_call.1} parent=5 // pred_fallthru
        _
      %p222 = scmp.lt.s32.totalorder %s15, 2
      // Predicated region
      $region29: #{tpu_custom_call.1} parent=5 // pred_check
        %p223 = pneg %p222
      $region30: #{tpu_custom_call.1} parent=5 // pred_check_branch
        %225 = sbr.rel (%p223) target = $region32
      $region31: #{tpu_custom_call.1} parent=5 // pred_region
        // Predicated region
        $region33: #{tpu_custom_call.1} parent=31 // pred_check
          %p226 = pneg %p49
        $region34: #{tpu_custom_call.1} parent=31 // pred_check_branch
          %228 = sbr.rel (%p226) target = $region36
        $region35: #{tpu_custom_call.1} parent=31 // pred_region
          %s229 = smul.u32 2, %s23
          %p230 = scmp.lt.s32.totalorder %s22, 1
          %s231 = scalar_select %p230, %s22, 1
          %p232 = scmp.lt.s32.totalorder %s229, 1
          %s233 = scalar_select %p232, %s229, 1
          %s234 = smul.addr %s231, 2
          %s235 = sadd.s32 %s233, %s234
          %s236 = smul.addr %s235, 4
          %s237 = scalar_lea.vmem %s0, %s236
          %s238 = smul.u32 2, %s23
        $region36: #{tpu_custom_call.1} parent=31 // pred_fallthru
          _
        // Predicated region
        $region37: #{tpu_custom_call.1} parent=31 // pred_check
          %p239 = pneg %p77
        $region38: #{tpu_custom_call.1} parent=31 // pred_check_branch
          %241 = sbr.rel (%p239) target = $region40
        $region39: #{tpu_custom_call.1} parent=31 // pred_region
          %s242 = smul.u32 2, %s23
          %p243 = scmp.lt.s32.totalorder %s22, 1
          %s244 = scalar_select %p243, %s22, 1
          %p245 = scmp.lt.s32.totalorder %s242, 1
          %s246 = scalar_select %p245, %s242, 1
          %s247 = smul.addr %s244, 2
          %s248 = sadd.s32 %s246, %s247
          %s249 = smul.addr %s248, 8
          %s250 = scalar_lea.vmem %s1, %s249
          %s251 = smul.u32 2, %s23
        $region40: #{tpu_custom_call.1} parent=31 // pred_fallthru
          _
      $region32: #{tpu_custom_call.1} parent=5 // pred_fallthru
        _
      %p252 = scmp.le.s32.totalorder 1, %s15
      %p253 = scmp.lt.s32.totalorder %s15, 3
      %p254 = pnand %p252, %p253
      %p255 = pneg %p254
      // Predicated region
      $region41: #{tpu_custom_call.1} parent=5 // pred_check
        _
      $region42: #{tpu_custom_call.1} parent=5 // pred_check_branch
        %257 = sbr.rel (%p254) target = $region44
      $region43: #{tpu_custom_call.1} parent=5 // pred_region
        %s258 = ssub.s32 %s15, 1
        %s259 = smul.u32 2, %s25
        %p260 = scmp.lt.s32.totalorder %s24, 1
        %s261 = scalar_select %p260, %s24, 1
        %p262 = scmp.lt.s32.totalorder %s259, 1
        %s263 = scalar_select %p262, %s259, 1
        %s264 = smul.addr %s261, 2
        %s265 = sadd.s32 %s263, %s264
        %s266 = smul.addr %s265, 4
        %s267 = scalar_lea.vmem %s0, %s266
        %p268 = pneg %p55
        %p269 = pneg %p52
        %s270 = smul.u32 2, %s25
        %p271 = scmp.lt.s32.totalorder %s24, 1
        %s272 = scalar_select %p271, %s24, 1
        %p273 = scmp.lt.s32.totalorder %s270, 1
        %s274 = scalar_select %p273, %s270, 1
        %s275 = smul.addr %s272, 2
        %s276 = sadd.s32 %s274, %s275
        %s277 = smul.addr %s276, 8
        %s278 = scalar_lea.vmem %s1, %s277
        %p279 = pneg %p83
        %p280 = pneg %p80
        %p281 = pneg %p104
        %p282 = pneg %p101
        %p283 = pneg %p125
        %p284 = pneg %p122
        %p285 = pneg %p146
        %p286 = pneg %p143
        %p287 = pneg %p167
        %p288 = pneg %p164
        %p289 = pneg %p195
        %p290 = pneg %p192
        %s291 = sand.u32 %s182, 1
        %s292 = scalar_lea.sflag [#allocation3], %s291
        %s293 = sand.u32 %s182, 1
        %s294 = smul.addr %s293, 16
        %s295 = scalar_lea.vmem [#allocation2], %s294
        %s296 = smul.u32 2, %s25
        %p297 = scmp.lt.s32.totalorder %s24, 1
        %s298 = scalar_select %p297, %s24, 1
        %p299 = scmp.lt.s32.totalorder %s296, 1
        %s300 = scalar_select %p299, %s296, 1
        %s301 = smul.addr %s298, 2
        %s302 = sadd.s32 %s300, %s301
        %s303 = smul.addr %s302, 4
        %s304 = scalar_lea.vmem %s0, %s303
        %s305 = smul.u32 2, %s25
        %s306 = smul.u32 2, %s25
        %p307 = scmp.lt.s32.totalorder %s24, 1
        %s308 = scalar_select %p307, %s24, 1
        %p309 = scmp.lt.s32.totalorder %s306, 1
        %s310 = scalar_select %p309, %s306, 1
        %s311 = smul.addr %s308, 2
        %s312 = sadd.s32 %s310, %s311
        %s313 = smul.addr %s312, 8
        %s314 = scalar_lea.vmem %s1, %s313
        %s315 = smul.u32 2, %s25
        %s316 = smul.u32 2, %s25
        %v317 = vld [vmem:[%s2] sm:$0xff]
        %v318 = vld [vmem:[%s2 + $0x8] sm:$0xff]
        %v319 = vld [vmem:[%s2 + $0x10] sm:$0xff]
        %v320 = vld [vmem:[%s2 + $0x18] sm:$0xff]
        %v321 = vld [vmem:[%s2 + $0x20] sm:$0xff]
        %v322 = vld [vmem:[%s2 + $0x28] sm:$0xff]
        %v323 = vld [vmem:[%s2 + $0x30] sm:$0xff]
        %v324 = vld [vmem:[%s2 + $0x38] sm:$0xff]
        %v325 = vld [vmem:[%s2 + $0x40] sm:$0xff]
        %v326 = vld [vmem:[%s2 + $0x48] sm:$0xff]
        %v327 = vld [vmem:[%s2 + $0x50] sm:$0xff]
        %v328 = vld [vmem:[%s2 + $0x58] sm:$0xff]
        %v329 = vld [vmem:[%s2 + $0x60] sm:$0xff]
        %v330 = vld [vmem:[%s2 + $0x68] sm:$0xff]
        %v331 = vld [vmem:[%s2 + $0x70] sm:$0xff]
        %v332 = vld [vmem:[%s2 + $0x78] sm:$0xff]
        %v333 = vld [vmem:[%s304] sm:$0xff]
        %v334 = vld [vmem:[%s3] sm:$0xff]
        %v335 = vld [vmem:[%s3 + $0x8] sm:$0xff]
        %v336 = vld [vmem:[%s3 + $0x10] sm:$0xff]
        %v337 = vld [vmem:[%s3 + $0x18] sm:$0xff]
        %v338 = vld [vmem:[%s3 + $0x20] sm:$0xff]
        %v339 = vld [vmem:[%s3 + $0x28] sm:$0xff]
        %v340 = vld [vmem:[%s3 + $0x30] sm:$0xff]
        %v341 = vld [vmem:[%s3 + $0x38] sm:$0xff]
        %v342 = vld [vmem:[%s3 + $0x40] sm:$0xff]
        %v343 = vld [vmem:[%s3 + $0x48] sm:$0xff]
        %v344 = vld [vmem:[%s3 + $0x50] sm:$0xff]
        %v345 = vld [vmem:[%s3 + $0x58] sm:$0xff]
        %v346 = vld [vmem:[%s3 + $0x60] sm:$0xff]
        %v347 = vld [vmem:[%s3 + $0x68] sm:$0xff]
        %v348 = vld [vmem:[%s3 + $0x70] sm:$0xff]
        %v349 = vld [vmem:[%s3 + $0x78] sm:$0xff]
        %351 = vset.pattern.permute.xlu0 0
        %352 = vperm.xlu0 %351, %v334
        %v353 = vpop.permute.xlu0 %352
        %356 = vset.pattern.permute.xlu0 0
        %357 = vperm.xlu0 %356, %v335
        %v358 = vpop.permute.xlu0 %357
        %361 = vset.pattern.permute.xlu0 0
        %362 = vperm.xlu0 %361, %v336
        %v363 = vpop.permute.xlu0 %362
        %366 = vset.pattern.permute.xlu0 0
        %367 = vperm.xlu0 %366, %v337
        %v368 = vpop.permute.xlu0 %367
        %371 = vset.pattern.permute.xlu0 0
        %372 = vperm.xlu0 %371, %v338
        %v373 = vpop.permute.xlu0 %372
        %376 = vset.pattern.permute.xlu0 0
        %377 = vperm.xlu0 %376, %v339
        %v378 = vpop.permute.xlu0 %377
        %381 = vset.pattern.permute.xlu0 0
        %382 = vperm.xlu0 %381, %v340
        %v383 = vpop.permute.xlu0 %382
        %386 = vset.pattern.permute.xlu0 0
        %387 = vperm.xlu0 %386, %v341
        %v388 = vpop.permute.xlu0 %387
        %391 = vset.pattern.permute.xlu0 0
        %392 = vperm.xlu0 %391, %v342
        %v393 = vpop.permute.xlu0 %392
        %396 = vset.pattern.permute.xlu0 0
        %397 = vperm.xlu0 %396, %v343
        %v398 = vpop.permute.xlu0 %397
        %401 = vset.pattern.permute.xlu0 0
        %402 = vperm.xlu0 %401, %v344
        %v403 = vpop.permute.xlu0 %402
        %406 = vset.pattern.permute.xlu0 0
        %407 = vperm.xlu0 %406, %v345
        %v408 = vpop.permute.xlu0 %407
        %411 = vset.pattern.permute.xlu0 0
        %412 = vperm.xlu0 %411, %v346
        %v413 = vpop.permute.xlu0 %412
        %416 = vset.pattern.permute.xlu0 0
        %417 = vperm.xlu0 %416, %v347
        %v418 = vpop.permute.xlu0 %417
        %421 = vset.pattern.permute.xlu0 0
        %422 = vperm.xlu0 %421, %v348
        %v423 = vpop.permute.xlu0 %422
        %426 = vset.pattern.permute.xlu0 0
        %427 = vperm.xlu0 %426, %v349
        %v428 = vpop.permute.xlu0 %427
        %v431 = vcombine.high %v333, %v333
        %vm432 = vcmask 31744
        %v434 = vsel %vm432, %v317, 0
        %v437 = vsel %vm432, %v318, 0
        %v440 = vsel %vm432, %v319, 0
        %v443 = vsel %vm432, %v320, 0
        %v446 = vsel %vm432, %v321, 0
        %v449 = vsel %vm432, %v322, 0
        %v452 = vsel %vm432, %v323, 0
        %v455 = vsel %vm432, %v324, 0
        %v458 = vsel %vm432, %v325, 0
        %v461 = vsel %vm432, %v326, 0
        %v464 = vsel %vm432, %v327, 0
        %v467 = vsel %vm432, %v328, 0
        %v470 = vsel %vm432, %v329, 0
        %v473 = vsel %vm432, %v330, 0
        %v476 = vsel %vm432, %v331, 0
        %v479 = vsel %vm432, %v332, 0
        %vm481 = vcmask 1043456
        %v482 = vsel %vm481, %v333, 0
        %v484 = vsel %vm481, %v431, 0
        %486 = vmatprep.subr.mxu0 0.0
        %487 = vmatpush1.msra.mxu0 0.0
        %488 = vmatprep.subr.mxu0 0.0
        %489 = vmatpush1.msra.mxu0 0.0
        %490 = vmatprep.subr.mxu0 0.0
        %491 = vmatpush1.msra.mxu0 0.0
        %492 = vmatprep.subr.mxu0 0.0
        %493 = vmatpush1.msra.mxu0 0.0
        %494 = vmatprep.subr.mxu0 0.0
        %495 = vmatpush1.msra.mxu0 0.0
        %496 = vmatprep.subr.mxu0 0.0
        %497 = vmatpush1.msra.mxu0 0.0
        %498 = vmatprep.subr.mxu0 0.0
        %499 = vmatpush1.msra.mxu0 0.0
        %500 = vmatprep.subr.mxu0 0.0
        %501 = vmatpush1.msra.mxu0 0.0
        %502 = vmatprep.subr.mxu0 0.0
        %503 = vmatpush1.msra.mxu0 0.0
        %504 = vmatprep.subr.mxu0 0.0
        %505 = vmatpush1.msra.mxu0 0.0
        %506 = vmatprep.subr.mxu0 0.0
        %507 = vmatpush1.msra.mxu0 0.0
        %508 = vmatprep.subr.mxu0 0.0
        %509 = vmatpush1.msra.mxu0 0.0
        %510 = vmatprep.subr.mxu0 0.0
        %511 = vmatpush1.msra.mxu0 0.0
        %512 = vmatprep.subr.mxu0 0.0
        %513 = vmatpush1.msra.mxu0 0.0
        %514 = vmatprep.subr.mxu0 0.0
        %515 = vmatpush1.msra.mxu0 0.0
        %516 = vmatprep.subr.mxu0 %v484
        %517 = vmatpush1.msra.mxu0 %v482
        %518 = vmatprep.subr.mxu0 0.0
        %519 = vmatpush2.msra.mxu0 0.0
        %520 = vmatprep.subr.mxu0 0.0
        %521 = vmatpush2.msra.mxu0 0.0
        %522 = vmatprep.subr.mxu0 0.0
        %523 = vmatpush2.msra.mxu0 0.0
        %524 = vmatprep.subr.mxu0 0.0
        %525 = vmatpush2.msra.mxu0 0.0
        %526 = vmatprep.subr.mxu0 0.0
        %527 = vmatpush2.msra.mxu0 0.0
        %528 = vmatprep.subr.mxu0 0.0
        %529 = vmatpush2.msra.mxu0 0.0
        %530 = vmatprep.subr.mxu0 0.0
        %531 = vmatpush2.msra.mxu0 0.0
        %532 = vmatprep.subr.mxu0 0.0
        %533 = vmatpush2.msra.mxu0 0.0
        %534 = vmatprep.subr.mxu0 0.0
        %535 = vmatpush2.msra.mxu0 0.0
        %536 = vmatprep.subr.mxu0 0.0
        %537 = vmatpush2.msra.mxu0 0.0
        %538 = vmatprep.subr.mxu0 0.0
        %539 = vmatpush2.msra.mxu0 0.0
        %540 = vmatprep.subr.mxu0 0.0
        %541 = vmatpush2.msra.mxu0 0.0
        %542 = vmatprep.subr.mxu0 0.0
        %543 = vmatpush2.msra.mxu0 0.0
        %544 = vmatprep.subr.mxu0 0.0
        %545 = vmatpush2.msra.mxu0 0.0
        %546 = vmatprep.subr.mxu0 0.0
        %547 = vmatpush2.msra.mxu0 0.0
        %548 = vmatprep.subr.mxu0 0.0
        %549 = vmatpush2.msra.mxu0 0.0
        %550 = vmatprep.mubr.f32.mxu0 0.0
        %551 = vmatmul.mubr.f32.gmra.mxu0 %v434
        %v552 = vpop.f32.mrf.mxu0
        %v553 = vadd.f32 %v353, %v552
        %v554 = vpop.f32.mrf.mxu0
        %v555 = vadd.f32 %v353, %v554
        %556 = vmatprep.mubr.f32.mxu0 0.0
        %557 = vmatmul.mubr.f32.gmra.mxu0 %v437
        %v558 = vpop.f32.mrf.mxu0
        %v559 = vadd.f32 %v358, %v558
        %v560 = vpop.f32.mrf.mxu0
        %v561 = vadd.f32 %v358, %v560
        %562 = vmatprep.mubr.f32.mxu0 0.0
        %563 = vmatmul.mubr.f32.gmra.mxu0 %v440
        %v564 = vpop.f32.mrf.mxu0
        %v565 = vadd.f32 %v363, %v564
        %v566 = vpop.f32.mrf.mxu0
        %v567 = vadd.f32 %v363, %v566
        %568 = vmatprep.mubr.f32.mxu0 0.0
        %569 = vmatmul.mubr.f32.gmra.mxu0 %v443
        %v570 = vpop.f32.mrf.mxu0
        %v571 = vadd.f32 %v368, %v570
        %v572 = vpop.f32.mrf.mxu0
        %v573 = vadd.f32 %v368, %v572
        %574 = vmatprep.mubr.f32.mxu0 0.0
        %575 = vmatmul.mubr.f32.gmra.mxu0 %v446
        %v576 = vpop.f32.mrf.mxu0
        %v577 = vadd.f32 %v373, %v576
        %v578 = vpop.f32.mrf.mxu0
        %v579 = vadd.f32 %v373, %v578
        %580 = vmatprep.mubr.f32.mxu0 0.0
        %581 = vmatmul.mubr.f32.gmra.mxu0 %v449
        %v582 = vpop.f32.mrf.mxu0
        %v583 = vadd.f32 %v378, %v582
        %v584 = vpop.f32.mrf.mxu0
        %v585 = vadd.f32 %v378, %v584
        %586 = vmatprep.mubr.f32.mxu0 0.0
        %587 = vmatmul.mubr.f32.gmra.mxu0 %v452
        %v588 = vpop.f32.mrf.mxu0
        %v589 = vadd.f32 %v383, %v588
        %v590 = vpop.f32.mrf.mxu0
        %v591 = vadd.f32 %v383, %v590
        %592 = vmatprep.mubr.f32.mxu0 0.0
        %593 = vmatmul.mubr.f32.gmra.mxu0 %v455
        %v594 = vpop.f32.mrf.mxu0
        %v595 = vadd.f32 %v388, %v594
        %v596 = vpop.f32.mrf.mxu0
        %v597 = vadd.f32 %v388, %v596
        %598 = vmatprep.mubr.f32.mxu0 0.0
        %599 = vmatmul.mubr.f32.gmra.mxu0 %v458
        %v600 = vpop.f32.mrf.mxu0
        %v601 = vadd.f32 %v393, %v600
        %v602 = vpop.f32.mrf.mxu0
        %v603 = vadd.f32 %v393, %v602
        %604 = vmatprep.mubr.f32.mxu0 0.0
        %605 = vmatmul.mubr.f32.gmra.mxu0 %v461
        %v606 = vpop.f32.mrf.mxu0
        %v607 = vadd.f32 %v398, %v606
        %v608 = vpop.f32.mrf.mxu0
        %v609 = vadd.f32 %v398, %v608
        %610 = vmatprep.mubr.f32.mxu0 0.0
        %611 = vmatmul.mubr.f32.gmra.mxu0 %v464
        %v612 = vpop.f32.mrf.mxu0
        %v613 = vadd.f32 %v403, %v612
        %v614 = vpop.f32.mrf.mxu0
        %v615 = vadd.f32 %v403, %v614
        %616 = vmatprep.mubr.f32.mxu0 0.0
        %617 = vmatmul.mubr.f32.gmra.mxu0 %v467
        %v618 = vpop.f32.mrf.mxu0
        %v619 = vadd.f32 %v408, %v618
        %v620 = vpop.f32.mrf.mxu0
        %v621 = vadd.f32 %v408, %v620
        %622 = vmatprep.mubr.f32.mxu0 0.0
        %623 = vmatmul.mubr.f32.gmra.mxu0 %v470
        %v624 = vpop.f32.mrf.mxu0
        %v625 = vadd.f32 %v413, %v624
        %v626 = vpop.f32.mrf.mxu0
        %v627 = vadd.f32 %v413, %v626
        %628 = vmatprep.mubr.f32.mxu0 0.0
        %629 = vmatmul.mubr.f32.gmra.mxu0 %v473
        %v630 = vpop.f32.mrf.mxu0
        %v631 = vadd.f32 %v418, %v630
        %v632 = vpop.f32.mrf.mxu0
        %v633 = vadd.f32 %v418, %v632
        %634 = vmatprep.mubr.f32.mxu0 0.0
        %635 = vmatmul.mubr.f32.gmra.mxu0 %v476
        %v636 = vpop.f32.mrf.mxu0
        %v637 = vadd.f32 %v423, %v636
        %v638 = vpop.f32.mrf.mxu0
        %v639 = vadd.f32 %v423, %v638
        %640 = vmatprep.mubr.f32.mxu0 0.0
        %641 = vmatmul.mubr.f32.gmra.mxu0 %v479
        %v642 = vpop.f32.mrf.mxu0
        %v643 = vadd.f32 %v428, %v642
        %v644 = vpop.f32.mrf.mxu0
        %v645 = vadd.f32 %v428, %v644
        %646 = vdwg.mxu0
        %v647 = vmax.f32 %v553, 0.0
        %v648 = vmax.f32 %v555, 0.0
        %v649 = vmax.f32 %v559, 0.0
        %v650 = vmax.f32 %v561, 0.0
        %v651 = vmax.f32 %v565, 0.0
        %v652 = vmax.f32 %v567, 0.0
        %v653 = vmax.f32 %v571, 0.0
        %v654 = vmax.f32 %v573, 0.0
        %v655 = vmax.f32 %v577, 0.0
        %v656 = vmax.f32 %v579, 0.0
        %v657 = vmax.f32 %v583, 0.0
        %v658 = vmax.f32 %v585, 0.0
        %v659 = vmax.f32 %v589, 0.0
        %v660 = vmax.f32 %v591, 0.0
        %v661 = vmax.f32 %v595, 0.0
        %v662 = vmax.f32 %v597, 0.0
        %v663 = vmax.f32 %v601, 0.0
        %v664 = vmax.f32 %v603, 0.0
        %v665 = vmax.f32 %v607, 0.0
        %v666 = vmax.f32 %v609, 0.0
        %v667 = vmax.f32 %v613, 0.0
        %v668 = vmax.f32 %v615, 0.0
        %v669 = vmax.f32 %v619, 0.0
        %v670 = vmax.f32 %v621, 0.0
        %v671 = vmax.f32 %v625, 0.0
        %v672 = vmax.f32 %v627, 0.0
        %v673 = vmax.f32 %v631, 0.0
        %v674 = vmax.f32 %v633, 0.0
        %v675 = vmax.f32 %v637, 0.0
        %v676 = vmax.f32 %v639, 0.0
        %v677 = vmax.f32 %v643, 0.0
        %v678 = vmax.f32 %v645, 0.0
        %v679 = vld [vmem:[%s4] sm:$0xff]
        %v680 = vld [vmem:[%s4 + $0x8] sm:$0xff]
        %v681 = vld [vmem:[%s5] sm:$0xff]
        %v682 = vld [vmem:[%s5 + $0x8] sm:$0xff]
        %684 = vset.pattern.permute.xlu0 0
        %685 = vperm.xlu0 %684, %v681
        %v686 = vpop.permute.xlu0 %685
        %689 = vset.pattern.permute.xlu0 0
        %690 = vperm.xlu0 %689, %v682
        %v691 = vpop.permute.xlu0 %690
        %693 = vmatprep.subr.mxu0 %v678
        %694 = vmatpush1.msra.mxu0 %v677
        %695 = vmatprep.subr.mxu0 %v676
        %696 = vmatpush1.msra.mxu0 %v675
        %697 = vmatprep.subr.mxu0 %v674
        %698 = vmatpush1.msra.mxu0 %v673
        %699 = vmatprep.subr.mxu0 %v672
        %700 = vmatpush1.msra.mxu0 %v671
        %701 = vmatprep.subr.mxu0 %v670
        %702 = vmatpush1.msra.mxu0 %v669
        %703 = vmatprep.subr.mxu0 %v668
        %704 = vmatpush1.msra.mxu0 %v667
        %705 = vmatprep.subr.mxu0 %v666
        %706 = vmatpush1.msra.mxu0 %v665
        %707 = vmatprep.subr.mxu0 %v664
        %708 = vmatpush1.msra.mxu0 %v663
        %709 = vmatprep.subr.mxu0 %v662
        %710 = vmatpush1.msra.mxu0 %v661
        %711 = vmatprep.subr.mxu0 %v660
        %712 = vmatpush1.msra.mxu0 %v659
        %713 = vmatprep.subr.mxu0 %v658
        %714 = vmatpush1.msra.mxu0 %v657
        %715 = vmatprep.subr.mxu0 %v656
        %716 = vmatpush1.msra.mxu0 %v655
        %717 = vmatprep.subr.mxu0 %v654
        %718 = vmatpush1.msra.mxu0 %v653
        %719 = vmatprep.subr.mxu0 %v652
        %720 = vmatpush1.msra.mxu0 %v651
        %721 = vmatprep.subr.mxu0 %v650
        %722 = vmatpush1.msra.mxu0 %v649
        %723 = vmatprep.subr.mxu0 %v648
        %724 = vmatpush1.msra.mxu0 %v647
        %725 = vmatprep.subr.mxu0 0.0
        %726 = vmatpush2.msra.mxu0 0.0
        %727 = vmatprep.subr.mxu0 0.0
        %728 = vmatpush2.msra.mxu0 0.0
        %729 = vmatprep.subr.mxu0 0.0
        %730 = vmatpush2.msra.mxu0 0.0
        %731 = vmatprep.subr.mxu0 0.0
        %732 = vmatpush2.msra.mxu0 0.0
        %733 = vmatprep.subr.mxu0 0.0
        %734 = vmatpush2.msra.mxu0 0.0
        %735 = vmatprep.subr.mxu0 0.0
        %736 = vmatpush2.msra.mxu0 0.0
        %737 = vmatprep.subr.mxu0 0.0
        %738 = vmatpush2.msra.mxu0 0.0
        %739 = vmatprep.subr.mxu0 0.0
        %740 = vmatpush2.msra.mxu0 0.0
        %741 = vmatprep.subr.mxu0 0.0
        %742 = vmatpush2.msra.mxu0 0.0
        %743 = vmatprep.subr.mxu0 0.0
        %744 = vmatpush2.msra.mxu0 0.0
        %745 = vmatprep.subr.mxu0 0.0
        %746 = vmatpush2.msra.mxu0 0.0
        %747 = vmatprep.subr.mxu0 0.0
        %748 = vmatpush2.msra.mxu0 0.0
        %749 = vmatprep.subr.mxu0 0.0
        %750 = vmatpush2.msra.mxu0 0.0
        %751 = vmatprep.subr.mxu0 0.0
        %752 = vmatpush2.msra.mxu0 0.0
        %753 = vmatprep.subr.mxu0 0.0
        %754 = vmatpush2.msra.mxu0 0.0
        %755 = vmatprep.subr.mxu0 0.0
        %756 = vmatpush2.msra.mxu0 0.0
        %757 = vmatprep.mubr.f32.mxu0 0.0
        %758 = vmatmul.mubr.f32.gmra.mxu0 %v679
        %v759 = vpop.f32.mrf.mxu0
        %v760 = vadd.f32 %v686, %v759
        %v761 = vpop.f32.mrf.mxu0
        %v762 = vadd.f32 %v686, %v761
        %763 = vmatprep.mubr.f32.mxu0 0.0
        %764 = vmatmul.mubr.f32.gmra.mxu0 %v680
        %v765 = vpop.f32.mrf.mxu0
        %v766 = vadd.f32 %v691, %v765
        %v767 = vpop.f32.mrf.mxu0
        %v768 = vadd.f32 %v691, %v767
        %769 = vdwg.mxu0
        %v770 = vmax.f32 %v760, 0.0
        %v771 = vmax.f32 %v762, 0.0
        %v772 = vmax.f32 %v766, 0.0
        %v773 = vmax.f32 %v768, 0.0
        %v774 = vand.u32 2147483647, %v760
        %v775 = vand.u32 2147483647, %v762
        %v776 = vand.u32 2147483647, %v766
        %v777 = vand.u32 2147483647, %v768
        %v778 = vsub.f32 0.0, %v774
        %v779 = vsub.f32 0.0, %v775
        %v780 = vsub.f32 0.0, %v776
        %v781 = vsub.f32 0.0, %v777
        %v782 = vmul.f32 %v778, 1.442695
        %v783 = vpow.pop %v782
        %v784 = vmul.f32 %v779, 1.442695
        %v785 = vpow.pop %v784
        %v786 = vmul.f32 %v780, 1.442695
        %v787 = vpow.pop %v786
        %v788 = vmul.f32 %v781, 1.442695
        %v789 = vpow.pop %v788
        %v790 = vadd.f32 %v783, 1.0
        %v791 = vlog2.pop %v790
        %v792 = vmul.f32 %v791, 0.6931472
        %v793 = vmul.f32 -0.5, %v783
        %v794 = vadd.f32 %v793, 1.0
        %v795 = vmul.f32 %v794, %v783
        %v796 = vand.u32 2147483647, %v783
        %vm797 = vcmp.lt.f32.partialorder %v796, 0.0004427343
        %v798 = vsel %vm797, %v795, %v792
        %v799 = vadd.f32 %v785, 1.0
        %v800 = vlog2.pop %v799
        %v801 = vmul.f32 %v800, 0.6931472
        %v802 = vmul.f32 -0.5, %v785
        %v803 = vadd.f32 %v802, 1.0
        %v804 = vmul.f32 %v803, %v785
        %v805 = vand.u32 2147483647, %v785
        %vm806 = vcmp.lt.f32.partialorder %v805, 0.0004427343
        %v807 = vsel %vm806, %v804, %v801
        %v808 = vadd.f32 %v787, 1.0
        %v809 = vlog2.pop %v808
        %v810 = vmul.f32 %v809, 0.6931472
        %v811 = vmul.f32 -0.5, %v787
        %v812 = vadd.f32 %v811, 1.0
        %v813 = vmul.f32 %v812, %v787
        %v814 = vand.u32 2147483647, %v787
        %vm815 = vcmp.lt.f32.partialorder %v814, 0.0004427343
        %v816 = vsel %vm815, %v813, %v810
        %v817 = vadd.f32 %v789, 1.0
        %v818 = vlog2.pop %v817
        %v819 = vmul.f32 %v818, 0.6931472
        %v820 = vmul.f32 -0.5, %v789
        %v821 = vadd.f32 %v820, 1.0
        %v822 = vmul.f32 %v821, %v789
        %v823 = vand.u32 2147483647, %v789
        %vm824 = vcmp.lt.f32.partialorder %v823, 0.0004427343
        %v825 = vsel %vm824, %v822, %v819
        %v826 = vadd.f32 %v770, %v798
        %v827 = vadd.f32 %v771, %v807
        %v828 = vadd.f32 %v772, %v816
        %v829 = vadd.f32 %v773, %v825
        %v830 = vld [vmem:[%s314] sm:$0xff]
        %v831 = vld [vmem:[%s314 + $0x8] sm:$0xff]
        %v832 = vlaneseq
        %v833 = vshrl.u32 %v832, 7
        %v834 = vsub.s32 0, %v833
        %v835 = vrot.slane %v826, %v834
        %v836 = vlaneseq
        %v837 = vshrl.u32 %v836, 7
        %v838 = vsub.s32 0, %v837
        %v839 = vrot.slane %v827, %v838
        %v840 = vsub.f32 %v835, %v830
        %v841 = vsub.f32 %v839, %v831
        %v842 = vmul.f32 %v840, %v840
        %v843 = vmul.f32 %v841, %v841
        %v844 = vmul.f32 %v842, -300.0
        %v845 = vmul.f32 %v843, -300.0
        %v846 = vmul.f32 %v844, 1.442695
        %v847 = vpow.pop %v846
        %v848 = vmul.f32 %v845, 1.442695
        %v849 = vpow.pop %v848
        %v850 = vmul.f32 %v847, %v840
        %v851 = vmul.f32 %v849, %v841
        %v852 = vadd.f32 %v850, 0.0
        %v853 = vadd.f32 %v851, 0.0
        %v854 = vlaneseq
        %v855 = vshrl.u32 %v854, 7
        %v856 = vsub.s32 1, %v855
        %v857 = vrot.slane %v826, %v856
        %v858 = vlaneseq
        %v859 = vshrl.u32 %v858, 7
        %v860 = vsub.s32 1, %v859
        %v861 = vrot.slane %v827, %v860
        %v862 = vsub.f32 %v857, %v830
        %v863 = vsub.f32 %v861, %v831
        %v864 = vmul.f32 %v862, %v862
        %v865 = vmul.f32 %v863, %v863
        %v866 = vmul.f32 %v864, -300.0
        %v867 = vmul.f32 %v865, -300.0
        %v868 = vmul.f32 %v866, 1.442695
        %v869 = vpow.pop %v868
        %v870 = vmul.f32 %v867, 1.442695
        %v871 = vpow.pop %v870
        %v872 = vmul.f32 %v869, %v862
        %v873 = vmul.f32 %v871, %v863
        %v874 = vadd.f32 %v852, %v872
        %v875 = vadd.f32 %v853, %v873
        %v876 = vlaneseq
        %v877 = vshrl.u32 %v876, 7
        %v878 = vsub.s32 2, %v877
        %v879 = vrot.slane %v826, %v878
        %v880 = vlaneseq
        %v881 = vshrl.u32 %v880, 7
        %v882 = vsub.s32 2, %v881
        %v883 = vrot.slane %v827, %v882
        %v884 = vsub.f32 %v879, %v830
        %v885 = vsub.f32 %v883, %v831
        %v886 = vmul.f32 %v884, %v884
        %v887 = vmul.f32 %v885, %v885
        %v888 = vmul.f32 %v886, -300.0
        %v889 = vmul.f32 %v887, -300.0
        %v890 = vmul.f32 %v888, 1.442695
        %v891 = vpow.pop %v890
        %v892 = vmul.f32 %v889, 1.442695
        %v893 = vpow.pop %v892
        %v894 = vmul.f32 %v891, %v884
        %v895 = vmul.f32 %v893, %v885
        %v896 = vadd.f32 %v874, %v894
        %v897 = vadd.f32 %v875, %v895
        %v898 = vlaneseq
        %v899 = vshrl.u32 %v898, 7
        %v900 = vsub.s32 3, %v899
        %v901 = vrot.slane %v826, %v900
        %v902 = vlaneseq
        %v903 = vshrl.u32 %v902, 7
        %v904 = vsub.s32 3, %v903
        %v905 = vrot.slane %v827, %v904
        %v906 = vsub.f32 %v901, %v830
        %v907 = vsub.f32 %v905, %v831
        %v908 = vmul.f32 %v906, %v906
        %v909 = vmul.f32 %v907, %v907
        %v910 = vmul.f32 %v908, -300.0
        %v911 = vmul.f32 %v909, -300.0
        %v912 = vmul.f32 %v910, 1.442695
        %v913 = vpow.pop %v912
        %v914 = vmul.f32 %v911, 1.442695
        %v915 = vpow.pop %v914
        %v916 = vmul.f32 %v913, %v906
        %v917 = vmul.f32 %v915, %v907
        %v918 = vadd.f32 %v896, %v916
        %v919 = vadd.f32 %v897, %v917
        %v920 = vlaneseq
        %v921 = vshrl.u32 %v920, 7
        %v922 = vsub.s32 4, %v921
        %v923 = vrot.slane %v826, %v922
        %v924 = vlaneseq
        %v925 = vshrl.u32 %v924, 7
        %v926 = vsub.s32 4, %v925
        %v927 = vrot.slane %v827, %v926
        %v928 = vsub.f32 %v923, %v830
        %v929 = vsub.f32 %v927, %v831
        %v930 = vmul.f32 %v928, %v928
        %v931 = vmul.f32 %v929, %v929
        %v932 = vmul.f32 %v930, -300.0
        %v933 = vmul.f32 %v931, -300.0
        %v934 = vmul.f32 %v932, 1.442695
        %v935 = vpow.pop %v934
        %v936 = vmul.f32 %v933, 1.442695
        %v937 = vpow.pop %v936
        %v938 = vmul.f32 %v935, %v928
        %v939 = vmul.f32 %v937, %v929
        %v940 = vadd.f32 %v918, %v938
        %v941 = vadd.f32 %v919, %v939
        %v942 = vlaneseq
        %v943 = vshrl.u32 %v942, 7
        %v944 = vsub.s32 5, %v943
        %v945 = vrot.slane %v826, %v944
        %v946 = vlaneseq
        %v947 = vshrl.u32 %v946, 7
        %v948 = vsub.s32 5, %v947
        %v949 = vrot.slane %v827, %v948
        %v950 = vsub.f32 %v945, %v830
        %v951 = vsub.f32 %v949, %v831
        %v952 = vmul.f32 %v950, %v950
        %v953 = vmul.f32 %v951, %v951
        %v954 = vmul.f32 %v952, -300.0
        %v955 = vmul.f32 %v953, -300.0
        %v956 = vmul.f32 %v954, 1.442695
        %v957 = vpow.pop %v956
        %v958 = vmul.f32 %v955, 1.442695
        %v959 = vpow.pop %v958
        %v960 = vmul.f32 %v957, %v950
        %v961 = vmul.f32 %v959, %v951
        %v962 = vadd.f32 %v940, %v960
        %v963 = vadd.f32 %v941, %v961
        %v964 = vlaneseq
        %v965 = vshrl.u32 %v964, 7
        %v966 = vsub.s32 6, %v965
        %v967 = vrot.slane %v826, %v966
        %v968 = vlaneseq
        %v969 = vshrl.u32 %v968, 7
        %v970 = vsub.s32 6, %v969
        %v971 = vrot.slane %v827, %v970
        %v972 = vsub.f32 %v967, %v830
        %v973 = vsub.f32 %v971, %v831
        %v974 = vmul.f32 %v972, %v972
        %v975 = vmul.f32 %v973, %v973
        %v976 = vmul.f32 %v974, -300.0
        %v977 = vmul.f32 %v975, -300.0
        %v978 = vmul.f32 %v976, 1.442695
        %v979 = vpow.pop %v978
        %v980 = vmul.f32 %v977, 1.442695
        %v981 = vpow.pop %v980
        %v982 = vmul.f32 %v979, %v972
        %v983 = vmul.f32 %v981, %v973
        %v984 = vadd.f32 %v962, %v982
        %v985 = vadd.f32 %v963, %v983
        %v986 = vlaneseq
        %v987 = vshrl.u32 %v986, 7
        %v988 = vsub.s32 7, %v987
        %v989 = vrot.slane %v826, %v988
        %v990 = vlaneseq
        %v991 = vshrl.u32 %v990, 7
        %v992 = vsub.s32 7, %v991
        %v993 = vrot.slane %v827, %v992
        %v994 = vsub.f32 %v989, %v830
        %v995 = vsub.f32 %v993, %v831
        %v996 = vmul.f32 %v994, %v994
        %v997 = vmul.f32 %v995, %v995
        %v998 = vmul.f32 %v996, -300.0
        %v999 = vmul.f32 %v997, -300.0
        %v1000 = vmul.f32 %v998, 1.442695
        %v1001 = vpow.pop %v1000
        %v1002 = vmul.f32 %v999, 1.442695
        %v1003 = vpow.pop %v1002
        %v1004 = vmul.f32 %v1001, %v994
        %v1005 = vmul.f32 %v1003, %v995
        %v1006 = vadd.f32 %v984, %v1004
        %v1007 = vadd.f32 %v985, %v1005
        %v1008 = vlaneseq
        %v1009 = vshrl.u32 %v1008, 7
        %v1010 = vsub.s32 0, %v1009
        %v1011 = vrot.slane %v828, %v1010
        %v1012 = vlaneseq
        %v1013 = vshrl.u32 %v1012, 7
        %v1014 = vsub.s32 0, %v1013
        %v1015 = vrot.slane %v829, %v1014
        %v1016 = vsub.f32 %v1011, %v830
        %v1017 = vsub.f32 %v1015, %v831
        %v1018 = vmul.f32 %v1016, %v1016
        %v1019 = vmul.f32 %v1017, %v1017
        %v1020 = vmul.f32 %v1018, -300.0
        %v1021 = vmul.f32 %v1019, -300.0
        %v1022 = vmul.f32 %v1020, 1.442695
        %v1023 = vpow.pop %v1022
        %v1024 = vmul.f32 %v1021, 1.442695
        %v1025 = vpow.pop %v1024
        %v1026 = vmul.f32 %v1023, %v1016
        %v1027 = vmul.f32 %v1025, %v1017
        %v1028 = vadd.f32 %v1006, %v1026
        %v1029 = vadd.f32 %v1007, %v1027
        %v1030 = vlaneseq
        %v1031 = vshrl.u32 %v1030, 7
        %v1032 = vsub.s32 1, %v1031
        %v1033 = vrot.slane %v828, %v1032
        %v1034 = vlaneseq
        %v1035 = vshrl.u32 %v1034, 7
        %v1036 = vsub.s32 1, %v1035
        %v1037 = vrot.slane %v829, %v1036
        %v1038 = vsub.f32 %v1033, %v830
        %v1039 = vsub.f32 %v1037, %v831
        %v1040 = vmul.f32 %v1038, %v1038
        %v1041 = vmul.f32 %v1039, %v1039
        %v1042 = vmul.f32 %v1040, -300.0
        %v1043 = vmul.f32 %v1041, -300.0
        %v1044 = vmul.f32 %v1042, 1.442695
        %v1045 = vpow.pop %v1044
        %v1046 = vmul.f32 %v1043, 1.442695
        %v1047 = vpow.pop %v1046
        %v1048 = vmul.f32 %v1045, %v1038
        %v1049 = vmul.f32 %v1047, %v1039
        %v1050 = vadd.f32 %v1028, %v1048
        %v1051 = vadd.f32 %v1029, %v1049
        %v1052 = vlaneseq
        %v1053 = vshrl.u32 %v1052, 7
        %v1054 = vsub.s32 2, %v1053
        %v1055 = vrot.slane %v828, %v1054
        %v1056 = vlaneseq
        %v1057 = vshrl.u32 %v1056, 7
        %v1058 = vsub.s32 2, %v1057
        %v1059 = vrot.slane %v829, %v1058
        %v1060 = vsub.f32 %v1055, %v830
        %v1061 = vsub.f32 %v1059, %v831
        %v1062 = vmul.f32 %v1060, %v1060
        %v1063 = vmul.f32 %v1061, %v1061
        %v1064 = vmul.f32 %v1062, -300.0
        %v1065 = vmul.f32 %v1063, -300.0
        %v1066 = vmul.f32 %v1064, 1.442695
        %v1067 = vpow.pop %v1066
        %v1068 = vmul.f32 %v1065, 1.442695
        %v1069 = vpow.pop %v1068
        %v1070 = vmul.f32 %v1067, %v1060
        %v1071 = vmul.f32 %v1069, %v1061
        %v1072 = vadd.f32 %v1050, %v1070
        %v1073 = vadd.f32 %v1051, %v1071
        %v1074 = vlaneseq
        %v1075 = vshrl.u32 %v1074, 7
        %v1076 = vsub.s32 3, %v1075
        %v1077 = vrot.slane %v828, %v1076
        %v1078 = vlaneseq
        %v1079 = vshrl.u32 %v1078, 7
        %v1080 = vsub.s32 3, %v1079
        %v1081 = vrot.slane %v829, %v1080
        %v1082 = vsub.f32 %v1077, %v830
        %v1083 = vsub.f32 %v1081, %v831
        %v1084 = vmul.f32 %v1082, %v1082
        %v1085 = vmul.f32 %v1083, %v1083
        %v1086 = vmul.f32 %v1084, -300.0
        %v1087 = vmul.f32 %v1085, -300.0
        %v1088 = vmul.f32 %v1086, 1.442695
        %v1089 = vpow.pop %v1088
        %v1090 = vmul.f32 %v1087, 1.442695
        %v1091 = vpow.pop %v1090
        %v1092 = vmul.f32 %v1089, %v1082
        %v1093 = vmul.f32 %v1091, %v1083
        %v1094 = vadd.f32 %v1072, %v1092
        %v1095 = vadd.f32 %v1073, %v1093
        %v1096 = vlaneseq
        %v1097 = vshrl.u32 %v1096, 7
        %v1098 = vsub.s32 4, %v1097
        %v1099 = vrot.slane %v828, %v1098
        %v1100 = vlaneseq
        %v1101 = vshrl.u32 %v1100, 7
        %v1102 = vsub.s32 4, %v1101
        %v1103 = vrot.slane %v829, %v1102
        %v1104 = vsub.f32 %v1099, %v830
        %v1105 = vsub.f32 %v1103, %v831
        %v1106 = vmul.f32 %v1104, %v1104
        %v1107 = vmul.f32 %v1105, %v1105
        %v1108 = vmul.f32 %v1106, -300.0
        %v1109 = vmul.f32 %v1107, -300.0
        %v1110 = vmul.f32 %v1108, 1.442695
        %v1111 = vpow.pop %v1110
        %v1112 = vmul.f32 %v1109, 1.442695
        %v1113 = vpow.pop %v1112
        %v1114 = vmul.f32 %v1111, %v1104
        %v1115 = vmul.f32 %v1113, %v1105
        %v1116 = vadd.f32 %v1094, %v1114
        %v1117 = vadd.f32 %v1095, %v1115
        %v1118 = vlaneseq
        %v1119 = vshrl.u32 %v1118, 7
        %v1120 = vsub.s32 5, %v1119
        %v1121 = vrot.slane %v828, %v1120
        %v1122 = vlaneseq
        %v1123 = vshrl.u32 %v1122, 7
        %v1124 = vsub.s32 5, %v1123
        %v1125 = vrot.slane %v829, %v1124
        %v1126 = vsub.f32 %v1121, %v830
        %v1127 = vsub.f32 %v1125, %v831
        %v1128 = vmul.f32 %v1126, %v1126
        %v1129 = vmul.f32 %v1127, %v1127
        %v1130 = vmul.f32 %v1128, -300.0
        %v1131 = vmul.f32 %v1129, -300.0
        %v1132 = vmul.f32 %v1130, 1.442695
        %v1133 = vpow.pop %v1132
        %v1134 = vmul.f32 %v1131, 1.442695
        %v1135 = vpow.pop %v1134
        %v1136 = vmul.f32 %v1133, %v1126
        %v1137 = vmul.f32 %v1135, %v1127
        %v1138 = vadd.f32 %v1116, %v1136
        %v1139 = vadd.f32 %v1117, %v1137
        %v1140 = vlaneseq
        %v1141 = vshrl.u32 %v1140, 7
        %v1142 = vsub.s32 6, %v1141
        %v1143 = vrot.slane %v828, %v1142
        %v1144 = vlaneseq
        %v1145 = vshrl.u32 %v1144, 7
        %v1146 = vsub.s32 6, %v1145
        %v1147 = vrot.slane %v829, %v1146
        %v1148 = vsub.f32 %v1143, %v830
        %v1149 = vsub.f32 %v1147, %v831
        %v1150 = vmul.f32 %v1148, %v1148
        %v1151 = vmul.f32 %v1149, %v1149
        %v1152 = vmul.f32 %v1150, -300.0
        %v1153 = vmul.f32 %v1151, -300.0
        %v1154 = vmul.f32 %v1152, 1.442695
        %v1155 = vpow.pop %v1154
        %v1156 = vmul.f32 %v1153, 1.442695
        %v1157 = vpow.pop %v1156
        %v1158 = vmul.f32 %v1155, %v1148
        %v1159 = vmul.f32 %v1157, %v1149
        %v1160 = vadd.f32 %v1138, %v1158
        %v1161 = vadd.f32 %v1139, %v1159
        %v1162 = vlaneseq
        %v1163 = vshrl.u32 %v1162, 7
        %v1164 = vsub.s32 7, %v1163
        %v1165 = vrot.slane %v828, %v1164
        %v1166 = vlaneseq
        %v1167 = vshrl.u32 %v1166, 7
        %v1168 = vsub.s32 7, %v1167
        %v1169 = vrot.slane %v829, %v1168
        %v1170 = vsub.f32 %v1165, %v830
        %v1171 = vsub.f32 %v1169, %v831
        %v1172 = vmul.f32 %v1170, %v1170
        %v1173 = vmul.f32 %v1171, %v1171
        %v1174 = vmul.f32 %v1172, -300.0
        %v1175 = vmul.f32 %v1173, -300.0
        %v1176 = vmul.f32 %v1174, 1.442695
        %v1177 = vpow.pop %v1176
        %v1178 = vmul.f32 %v1175, 1.442695
        %v1179 = vpow.pop %v1178
        %v1180 = vmul.f32 %v1177, %v1170
        %v1181 = vmul.f32 %v1179, %v1171
        %v1182 = vadd.f32 %v1160, %v1180
        %v1183 = vadd.f32 %v1161, %v1181
        %v1184 = vadd.f32 %v830, %v1182
        %v1185 = vadd.f32 %v831, %v1183
        %1186 = vst [vmem:[%s295] sm:$0xff] %v1184
        %1187 = vst [vmem:[%s295 + $0x8] sm:$0xff] %v1185
        %s1188 = sand.u32 %s182, 1
        %s1189 = scalar_lea.sflag [#allocation3], %s1188
        %s1190 = sand.u32 %s182, 1
        %s1191 = smul.addr %s1190, 16
        %s1192 = scalar_lea.vmem [#allocation2], %s1191
        // Predicated region
        $region45: #{tpu_custom_call.1} parent=43 // pred_check
          %p1193 = pneg %p192
        $region46: #{tpu_custom_call.1} parent=43 // pred_check_branch
          %1195 = sbr.rel (%p1193) target = $region48
        $region47: #{tpu_custom_call.1} parent=43 // pred_region
          %s1196 = smul.u32 2, %s25
          %s1198 = ssub.s32 256, 256
          %1199 = vsyncadd %s1189, %s1198
          %s1200 = smul.addr %s24, 2
          %s1201 = sadd.s32 %s1196, %s1200
          %s1202 = smul.addr %s1201, 128
          %s1203 = scalar_lea.hbm %s6, %s1202
          %s1205 = sshll.u32 %s1192, 4
          %s1206 = int_to_ptr.vmem [resolvable:$true] %s1205
          %1208 = dma.vmem_to_hbm [thread:$0]  %s1206, 256, %s1203, %s1189
        $region48: #{tpu_custom_call.1} parent=43 // pred_fallthru
          _
      $region44: #{tpu_custom_call.1} parent=5 // pred_fallthru
        _
      %p1209 = scmp.le.s32.totalorder 2, %s15
      // Predicated region
      $region49: #{tpu_custom_call.1} parent=5 // pred_check
        %p1210 = pneg %p1209
      $region50: #{tpu_custom_call.1} parent=5 // pred_check_branch
        %1212 = sbr.rel (%p1210) target = $region52
      $region51: #{tpu_custom_call.1} parent=5 // pred_region
        %s1213 = ssub.s32 %s15, 2
        // Predicated region
        $region53: #{tpu_custom_call.1} parent=51 // pred_check
          %p1214 = pneg %p198
        $region54: #{tpu_custom_call.1} parent=51 // pred_check_branch
          %1216 = sbr.rel (%p1214) target = $region56
        $region55: #{tpu_custom_call.1} parent=51 // pred_region
          %s1217 = sand.u32 %s183, 1
          %s1218 = scalar_lea.sflag [#allocation3], %s1217
          %s1219 = sand.u32 %s183, 1
          %s1220 = smul.addr %s1219, 16
          %s1221 = scalar_lea.vmem [#allocation2], %s1220
          %1222 = dma.done %s1218, 256
        $region56: #{tpu_custom_call.1} parent=51 // pred_fallthru
          _
      $region52: #{tpu_custom_call.1} parent=5 // pred_fallthru
        _
    $region6: #{tpu_custom_call.1} parent=1 // loop_footer
      %s19 = sadd.s32 1, %s15
    $region7: #{tpu_custom_call.1} parent=1 // loop_footer_branch
      %14 = sbr.rel target = $region3
    $region8: #{tpu_custom_call.1} parent=1 // loop_exit
      _
    %1223 = vsyncpa [#allocation3], 1
    %s1224 = scalar_lea.sflag [#allocation3], 1
    %1225 = vsyncpa %s1224, 1

</llo_original>
